<compile_context>
chip_gen: v7x
topology: tpu7x:2x2x1
jax: 0.10.0
libtpu: 0.0.40
codegen_flags: <defaults>
</compile_context>

<pallas_src>
import math
import jax
import jax.numpy as jnp
from jax import lax
from jax.experimental import pallas as pl
from jax.experimental.pallas import tpu as pltpu


HEAD_TOKENS_PER_STEP = 4          # token chunks contracted per MLP-head grid step


# ----------------------------------------------------------------------------- helpers
def _round_up(v, m):
    return (v + m - 1) // m * m


_VMEM_LIMIT_CACHE = None


def _vmem_limit():
    """Per-generation VMEM budget (v7x has 64 MiB physical, others 128 MiB)."""
    global _VMEM_LIMIT_CACHE
    if _VMEM_LIMIT_CACHE is None:
        try:
            cap = int(pltpu.get_tpu_info().vmem_capacity_bytes)
        except Exception:
            cap = 128 * 1024 * 1024
        _VMEM_LIMIT_CACHE = int(min(cap // 2, 64 * 1024 * 1024))
    return _VMEM_LIMIT_CACHE


def generate_patches(img_size, patch_dim):
    """Deterministic UNEQUAL grid: cut points proportional to cumulative 1..patch_dim."""
    total = patch_dim * (patch_dim + 1) // 2
    cuts, acc = [0], 0
    for i in range(1, patch_dim + 1):
        acc += i
        cuts.append(int(round(img_size * acc / total)))
    cuts[-1] = img_size
    patches = []
    for r in range(patch_dim):
        for c in range(patch_dim):
            patches.append((cuts[r], cuts[c], cuts[r + 1], cuts[c + 1]))
    return patches


def positionalencoding2d2(d_model, length):
    """Deterministic sinusoidal positional encoding, shape (1, length, d_model)."""
    pos = jnp.arange(length, dtype=jnp.float32)[:, None]
    i = jnp.arange(0, d_model, 2, dtype=jnp.float32)
    div = jnp.exp(-jnp.log(10000.0) * i / d_model)
    pe = jnp.zeros((length, d_model), jnp.float32)
    pe = pe.at[:, 0::2].set(jnp.sin(pos * div))
    pe = pe.at[:, 1::2].set(jnp.cos(pos * div))
    return pe[None]


def _layer_norm(x, g, b, eps=1e-5):
    mu = jnp.mean(x, axis=-1, keepdims=True)
    xc = x - mu
    var = jnp.mean(xc * xc, axis=-1, keepdims=True)
    return xc * lax.rsqrt(var + eps) * g + b


def _erf(x):
    # Abramowitz & Stegun 7.1.26 rational approximation (max abs err ~1.5e-7).
    a1, a2, a3, a4, a5 = 0.254829592, -0.284496736, 1.421413741, -1.453152027, 1.061405429
    p = 0.3275911
    ax = jnp.abs(x)
    t = 1.0 / (1.0 + p * ax)
    poly = ((((a5 * t + a4) * t + a3) * t + a2) * t + a1) * t
    y = 1.0 - poly * jnp.exp(-ax * ax)
    return jnp.where(x >= 0.0, y, -y)


def _gelu_exact(x):
    return 0.5 * x * (1.0 + _erf(x * (1.0 / math.sqrt(2.0))))


# --------------------------------------------------------------- backbone / CLS pooling
def make_pool_kernel(inv_hw):
    def kernel(x_ref, wb_ref, bb_ref, wc_ref, bc_ref, ob_ref, oc_ref, acc_ref):
        i = pl.program_id(0)

        @pl.when(i == 0)
        def _():
            acc_ref[...] = jnp.zeros_like(acc_ref)

        acc_ref[...] += jnp.sum(x_ref[...], axis=-1)                    # (B, C)

        @pl.when(i == pl.num_programs(0) - 1)
        def _():
            pooled = (acc_ref[...] * inv_hw).astype(jnp.bfloat16)
            ob_ref[...] = (jnp.dot(pooled, wb_ref[...],
                                   preferred_element_type=jnp.float32)
                           + bb_ref[...]).astype(ob_ref.dtype)
            oc_ref[...] = (jnp.dot(pooled, wc_ref[...],
                                   preferred_element_type=jnp.float32)
                           + bc_ref[...]).astype(oc_ref.dtype)
    return kernel


def pool_linear2(x_img, wb, bb, wc, bc):
    """Global-avg-pool streamed over spatial chunks + two linear heads (backbone/CLS)."""
    B, C, H, W = x_img.shape
    D = wb.shape[1]
    HW = H * W
    TW = 128
    HWp = _round_up(HW, TW)
    x3 = x_img.reshape(B, C, HW)
    if HWp != HW:
        x3 = jnp.pad(x3, ((0, 0), (0, 0), (0, HWp - HW)))
    const = lambda i: (0, 0)
    return pl.pallas_call(
        make_pool_kernel(1.0 / HW),
        grid=(HWp // TW,),
        in_specs=[pl.BlockSpec((B, C, TW), lambda i: (0, 0, i)),
                  pl.BlockSpec((C, D), const), pl.BlockSpec((1, D), const),
                  pl.BlockSpec((C, D), const), pl.BlockSpec((1, D), const)],
        out_specs=(pl.BlockSpec((B, D), const), pl.BlockSpec((B, D), const)),
        out_shape=(jax.ShapeDtypeStruct((B, D), jnp.bfloat16),
                   jax.ShapeDtypeStruct((B, D), jnp.bfloat16)),
        scratch_shapes=[pltpu.VMEM((B, C), jnp.float32)],
        compiler_params=pltpu.CompilerParams(
            dimension_semantics=("arbitrary",), vmem_limit_bytes=_vmem_limit()),
    )(x3, wb, bb, wc, bc)


# ------------------------------------------------------------------------ patch embed
def patch_embed_kernel(x_ref, w_ref, b_ref, pos_ref, o_ref):
    # one unequal patch "convolution" (== linear over padded flat patch) per grid step
    o_ref[0] = (jnp.dot(x_ref[0], w_ref[0], preferred_element_type=jnp.float32)
                + b_ref[0] + pos_ref[0]).astype(o_ref.dtype)


def patch_embed(flat, w, b, pos):
    P, B, Kpad = flat.shape
    D = w.shape[-1]
    return pl.pallas_call(
        patch_embed_kernel,
        grid=(P,),
        in_specs=[pl.BlockSpec((1, B, Kpad), lambda p: (p, 0, 0)),
                  pl.BlockSpec((1, Kpad, D), lambda p: (p, 0, 0)),
                  pl.BlockSpec((1, 1, D), lambda p: (p, 0, 0)),
                  pl.BlockSpec((1, 1, D), lambda p: (p, 0, 0))],
        out_specs=pl.BlockSpec((1, B, D), lambda p: (p, 0, 0)),
        out_shape=jax.ShapeDtypeStruct((P, B, D), jnp.bfloat16),
        compiler_params=pltpu.CompilerParams(
            dimension_semantics=("parallel",), vmem_limit_bytes=_vmem_limit()),
    )(flat, w, b, pos)


# ----------------------------------------------------------- fused transformer layer
def make_layer_kernel(B, H, D, rows):
    Dh = D // H
    scale = 1.0 / math.sqrt(Dh)

    def kernel(x_ref, wqkv_ref, bqkv_ref, wo_ref, bo_ref, g1_ref, be1_ref,
               w1_ref, b1_ref, w2_ref, b2_ref, g2_ref, be2_ref, o_ref):
        x = x_ref[...].astype(jnp.float32)                               # (rows, D)
        # fused QKV projection (bf16 MXU, f32 accumulate)
        qkv = (jnp.dot(x_ref[...], wqkv_ref[...],
                       preferred_element_type=jnp.float32) + bqkv_ref[...])
        q = qkv[:, :D] * scale                     # scale folded into q, not scores
        k = qkv[:, D:2 * D].astype(jnp.bfloat16)
        v = qkv[:, 2 * D:]

        # batch_first=False semantics: attention only WITHIN each token position's
        # group of B consecutive rows -> block-diagonal group mask.
        ri = lax.broadcasted_iota(jnp.int32, (rows, rows), 0) // B
        rj = lax.broadcasted_iota(jnp.int32, (rows, rows), 1) // B
        grp = ri == rj
        # per-head handling via LANE masks: q/k/v keep full 128-lane width, no Dh
        # slicing; the (rows, rows) score matrix stays in registers/VMEM only.
        lane_head = lax.broadcasted_iota(jnp.int32, (rows, D), 1) // Dh
        ctx = jnp.zeros((rows, D), jnp.float32)
        for h in range(H):                                               # static, small
            hm = lane_head == h
            qh = jnp.where(hm, q, 0.0).astype(jnp.bfloat16)
            s = lax.dot_general(qh, k, (((1,), (1,)), ((), ())),
                                preferred_element_type=jnp.float32)      # (rows, rows)
            s = jnp.where(grp, s, -1e30)
            s = s - jnp.max(s, axis=-1, keepdims=True)
            e = jnp.exp(s)
            p = (e / jnp.sum(e, axis=-1, keepdims=True)).astype(jnp.bfloat16)
            vh = jnp.where(hm, v, 0.0).astype(jnp.bfloat16)
            ctx = ctx + jnp.dot(p, vh, preferred_element_type=jnp.float32)

        attn = (jnp.dot(ctx.astype(jnp.bfloat16), wo_ref[...],
                        preferred_element_type=jnp.float32) + bo_ref[...])
        y = _layer_norm(x + attn, g1_ref[...], be1_ref[...])
        hh = jnp.maximum(jnp.dot(y.astype(jnp.bfloat16), w1_ref[...],
                                 preferred_element_type=jnp.float32) + b1_ref[...], 0.0)
        ff = (jnp.dot(hh.astype(jnp.bfloat16), w2_ref[...],
                      preferred_element_type=jnp.float32) + b2_ref[...])
        o_ref[...] = _layer_norm(y + ff, g2_ref[...], be2_ref[...]).astype(o_ref.dtype)
    return kernel


def transformer_layer(rows2, B, p, H):
    """rows2: (S*B, D) bf16 token-major rows.  Whole layer fused in one kernel,
    gridded over row blocks ("parallel")."""
    M, D = rows2.shape
    F = p["w1"].shape[1]
    # bf16-friendly row block (multiple of 16 sublanes); grows the grid for real S.
    rows_blk = (16 * B) // math.gcd(16, B)
    Mp = _round_up(M, rows_blk)
    x = jnp.pad(rows2, ((0, Mp - M), (0, 0))) if Mp != M else rows2
    row = lambda i: (i, 0)
    const = lambda i: (0, 0)
    out = pl.pallas_call(
        make_layer_kernel(B, H, D, rows_blk),
        grid=(Mp // rows_blk,),
        in_specs=[pl.BlockSpec((rows_blk, D), row),
                  pl.BlockSpec((D, 3 * D), const), pl.BlockSpec((1, 3 * D), const),
                  pl.BlockSpec((D, D), const), pl.BlockSpec((1, D), const),
                  pl.BlockSpec((1, D), const), pl.BlockSpec((1, D), const),
                  pl.BlockSpec((D, F), const), pl.BlockSpec((1, F), const),
                  pl.BlockSpec((F, D), const), pl.BlockSpec((1, D), const),
                  pl.BlockSpec((1, D), const), pl.BlockSpec((1, D), const)],
        out_specs=pl.BlockSpec((rows_blk, D), row),
        out_shape=jax.ShapeDtypeStruct((Mp, D), jnp.bfloat16),
        compiler_params=pltpu.CompilerParams(
            dimension_semantics=("parallel",), vmem_limit_bytes=_vmem_limit()),
    )(x, p["w_qkv"], p["b_qkv"], p["wo"], p["bo"], p["g1"], p["be1"],
      p["w1"], p["b1"], p["w2"], p["b2"], p["g2"], p["be2"])
    return out[:M] if Mp != M else out


# -------------------------------------------------------------------------- MLP head
def make_head_kernel(Th):
    def kernel(x_ref, g_ref, b_ref, w1_ref, b1_ref, w2_ref, b2_ref, o_ref, acc_ref):
        c = pl.program_id(0)

        @pl.when(c == 0)
        def _():
            acc_ref[...] = jnp.zeros_like(acc_ref)

        g = g_ref[...]
        be = b_ref[...]
        for t in range(Th):                                              # static chunk
            xln = _layer_norm(x_ref[t].astype(jnp.float32), g, be)
            acc_ref[...] += jnp.dot(xln.astype(jnp.bfloat16), w1_ref[t],
                                    preferred_element_type=jnp.float32)

        @pl.when(c == pl.num_programs(0) - 1)
        def _():
            hact = _gelu_exact(acc_ref[...] + b1_ref[...])
            o_ref[...] = (jnp.dot(hact.astype(jnp.bfloat16), w2_ref[...],
                                  preferred_element_type=jnp.float32) + b2_ref[...])
    return kernel


def mlp_head(xs3, ln_g, ln_b, w1, b1, w2, b2, num_classes):
    """Fused final LayerNorm + flatten-matmul (streamed over token chunks) + GELU +
    dense.  Output is lane-padded to 128 inside the kernel and sliced here."""
    Sf, B, D = xs3.shape
    Th = HEAD_TOKENS_PER_STEP
    Sp = w1.shape[0]                       # zero-padded at init to a multiple of Th
    if Sp != Sf:
        xs3 = jnp.pad(xs3, ((0, Sp - Sf), (0, 0), (0, 0)))
    Fm = w1.shape[-1]
    Cp = w2.shape[-1]
    const = lambda c: (0, 0)
    out = pl.pallas_call(
        make_head_kernel(Th),
        grid=(Sp // Th,),
        in_specs=[pl.BlockSpec((Th, B, D), lambda c: (c, 0, 0)),
                  pl.BlockSpec((1, D), const), pl.BlockSpec((1, D), const),
                  pl.BlockSpec((Th, D, Fm), lambda c: (c, 0, 0)),
                  pl.BlockSpec((1, Fm), const),
                  pl.BlockSpec((Fm, Cp), const), pl.BlockSpec((1, Cp), const)],
        out_specs=pl.BlockSpec((B, Cp), const),
        out_shape=jax.ShapeDtypeStruct((B, Cp), jnp.float32),
        scratch_shapes=[pltpu.VMEM((B, Fm), jnp.float32)],
        compiler_params=pltpu.CompilerParams(
            dimension_semantics=("arbitrary",), vmem_limit_bytes=_vmem_limit()),
    )(xs3, ln_g, ln_b, w1, b1, w2, b2)
    return out[:, :num_classes]


# ----------------------------------------------------------------------------- forward
def ievit_forward(x_img, params, cfg):
    B = x_img.shape[0]
    D, Hh, L = cfg["embed_dim"], cfg["num_heads"], cfg["num_layers"]
    Kpad = cfg["Kpad"]

    # backbone & CLS token (synthetic defs: global-avg-pool + linear), streamed kernel
    ximg, cls = pool_linear2(x_img, params["backbone_w"], params["backbone_b"],
                             params["cls_w"], params["cls_b"])            # (B, D) bf16

    # per-patch "conv" embeddings == linear over the flattened unequal patch
    # TODO(synk): the patch gather/zero-pad is still done by XLA; an in-kernel DMA
    #             gather from a pl.ANY image ref would remove this extra HBM pass.
    flat = []
    for (top, left, bottom, right) in cfg["patch_sizes"]:
        pch = x_img[:, :, top:bottom, left:right].reshape(B, -1)
        flat.append(jnp.pad(pch, ((0, 0), (0, Kpad - pch.shape[1]))))
    flat = jnp.stack(flat, axis=0).astype(jnp.bfloat16)                   # (P, B, Kpad)
    tok = patch_embed(flat, params["pe_w"], params["pe_b"], params["pos"])  # (P,B,D) bf16

    # token-major rows [cls | patches]; pos-embed folded in (cls gets the zero row)
    rows = jnp.concatenate([cls[None], tok], axis=0).reshape(-1, D)       # ((P+1)*B, D)

    # transformer layers; prepend backbone token after every layer (as in reference)
    for i in range(L):
        rows = transformer_layer(rows, B, params["layers"][i], Hh)
        rows = jnp.concatenate([ximg, rows], axis=0)

    Sf = rows.shape[0] // B
    xs3 = rows.reshape(Sf, B, D)
    return mlp_head(xs3, params["ln_g"], params["ln_b"],
                    params["mlp_w1"], params["mlp_b1"],
                    params["mlp_w2"], params["mlp_b2"], cfg["num_classes"])


# ----------------------------------------------------------------------------- params
def init_params(key, cfg):
    C, D, F = cfg["in_channels"], cfg["embed_dim"], cfg["dim_feedforward"]
    P, L = len(cfg["patch_sizes"]), cfg["num_layers"]
    Kpad = cfg["Kpad"]
    Sf = P + 1 + L
    Sp = _round_up(Sf, HEAD_TOKENS_PER_STEP)
    Cp = _round_up(cfg["num_classes"], 128)
    keys = iter(jax.random.split(key, 64 + 16 * L + 4 * P))

    def nrm(shape, dt=jnp.bfloat16, s=0.02):
        return (s * jax.random.normal(next(keys), shape, dtype=jnp.float32)).astype(dt)

    pe_w = []
    for (top, left, bottom, right) in cfg["patch_sizes"]:
        Kp = C * (bottom - top) * (right - left)
        pe_w.append(jnp.pad(nrm((Kp, D), dt=jnp.float32), ((0, Kpad - Kp), (0, 0))))

    # mlp_w1 stored pre-chunked (Sp, D, mlp) with zero pad chunks: identical math to
    # the ((P+1+L)*D, mlp_dim) flatten-matmul of the reference, streamed over tokens.
    mlp_w1 = jnp.zeros((Sp, D, cfg["mlp_dim"]), jnp.float32)
    mlp_w1 = mlp_w1.at[:Sf].set(nrm((Sf, D, cfg["mlp_dim"]), dt=jnp.float32))
    # mlp_w2 / b2 lane-padded to 128 output columns (unmasked stores), sliced later.
    mlp_w2 = jnp.zeros((cfg["mlp_dim"], Cp), jnp.float32)
    mlp_w2 = mlp_w2.at[:, :cfg["num_classes"]].set(
        nrm((cfg["mlp_dim"], cfg["num_classes"]), dt=jnp.float32))

    params = {
        "backbone_w": nrm((C, D)), "backbone_b": jnp.zeros((1, D), jnp.float32),
        "cls_w": nrm((C, D)), "cls_b": jnp.zeros((1, D), jnp.float32),
        "pe_w": jnp.stack(pe_w, axis=0).astype(jnp.bfloat16),             # (P, Kpad, D)
        "pe_b": nrm((P, 1, D), dt=jnp.float32),
        "pos": jnp.transpose(positionalencoding2d2(D, P), (1, 0, 2)),     # (P, 1, D)
        "ln_g": jnp.ones((1, D), jnp.float32), "ln_b": jnp.zeros((1, D), jnp.float32),
        "mlp_w1": mlp_w1.astype(jnp.bfloat16),
        "mlp_b1": jnp.zeros((1, cfg["mlp_dim"]), jnp.float32),
        "mlp_w2": mlp_w2.astype(jnp.bfloat16),
        "mlp_b2": jnp.zeros((1, Cp), jnp.float32),
        "layers": [],
    }
    for _ in range(L):
        params["layers"].append({
            "w_qkv": nrm((D, 3 * D)), "b_qkv": jnp.zeros((1, 3 * D), jnp.float32),
            "wo": nrm((D, D)), "bo": jnp.zeros((1, D), jnp.float32),
            "g1": jnp.ones((1, D), jnp.float32), "be1": jnp.zeros((1, D), jnp.float32),
            "w1": nrm((D, F)), "b1": jnp.zeros((1, F), jnp.float32),
            "w2": nrm((F, D)), "b2": jnp.zeros((1, D), jnp.float32),
            "g2": jnp.ones((1, D), jnp.float32), "be2": jnp.zeros((1, D), jnp.float32),
        })
    return params


# ----------------------------------------------------------------------------- main
if __name__ == "__main__":
    cfg = dict(img_size=16, patch_dim=2, in_channels=4, num_classes=10,
               embed_dim=128, num_heads=2, num_layers=2,
               dim_feedforward=256, mlp_dim=256)
    cfg["patch_sizes"] = sorted(generate_patches(cfg["img_size"], cfg["patch_dim"]),
                                key=lambda p: (p[0], p[1]))
    max_k = max(cfg["in_channels"] * (b - t) * (r - l)
                for (t, l, b, r) in cfg["patch_sizes"])
    cfg["Kpad"] = _round_up(max_k, 128)

    key = jax.random.PRNGKey(0)
    kx, kp = jax.random.split(key)
    x = jax.random.normal(
        kx, (2, cfg["in_channels"], cfg["img_size"], cfg["img_size"]), dtype=jnp.float32)
    params = init_params(kp, cfg)

    out = ievit_forward(x, params, cfg)
    out = jax.block_until_ready(out)
    assert out.shape == (2, cfg["num_classes"])
    assert bool(jnp.all(jnp.isfinite(out)))
    print("KERNEL_OK")
</pallas_src>

<mosaic_0001>
module attributes {stable_mosaic.version = 11 : i64} {
  func.func @kernel(%arg0: i32, %arg1: memref<2x4x128xf32, #tpu.memory_space<vmem>>, %arg2: memref<4x128xbf16, #tpu.memory_space<vmem>>, %arg3: memref<1x128xf32, #tpu.memory_space<vmem>>, %arg4: memref<4x128xbf16, #tpu.memory_space<vmem>>, %arg5: memref<1x128xf32, #tpu.memory_space<vmem>>, %arg6: memref<2x128xbf16, #tpu.memory_space<vmem>>, %arg7: memref<2x128xbf16, #tpu.memory_space<vmem>>, %arg8: memref<2x4xf32, #tpu.memory_space<vmem>>) attributes {dimension_semantics = [#tpu.dimension_semantics<arbitrary>], iteration_bounds = array<i64: 2>, scalar_prefetch = 0 : i64, scratch_operands = 1 : i64, tpu.core_type = #tpu.core_type<tc>, window_params = [{transform_indices = @transform_0, window_bounds = array<i64: 2, 4, 128>}, {pipeline_mode = #tpu.pipeline_mode<synchronous>, transform_indices = @transform_1, window_bounds = array<i64: 4, 128>}, {pipeline_mode = #tpu.pipeline_mode<synchronous>, transform_indices = @transform_2, window_bounds = array<i64: 1, 128>}, {pipeline_mode = #tpu.pipeline_mode<synchronous>, transform_indices = @transform_3, window_bounds = array<i64: 4, 128>}, {pipeline_mode = #tpu.pipeline_mode<synchronous>, transform_indices = @transform_4, window_bounds = array<i64: 1, 128>}, {pipeline_mode = #tpu.pipeline_mode<synchronous>, transform_indices = @transform_5, window_bounds = array<i64: 2, 128>}, {pipeline_mode = #tpu.pipeline_mode<synchronous>, transform_indices = @transform_6, window_bounds = array<i64: 2, 128>}]} {
    %c0_i32 = arith.constant 0 : i32
    %0 = arith.cmpi eq, %arg0, %c0_i32 : i32
    %1 = arith.extui %0 : i1 to i32
    %c0_i32_0 = arith.constant 0 : i32
    %2 = arith.cmpi ne, %1, %c0_i32_0 : i32
    scf.if %2 {
      %cst_8 = arith.constant 0.000000e+00 : f32
      %11 = vector.broadcast %cst_8 : f32 to vector<2x4xf32>
      %c0_9 = arith.constant 0 : index
      %c0_10 = arith.constant 0 : index
      %12 = vector.load %arg8[%c0_9, %c0_10] : memref<2x4xf32, #tpu.memory_space<vmem>>, vector<2x4xf32>
      tpu.vector_store %arg8[%c0_9, %c0_10], %11 {strides = array<i32>} : memref<2x4xf32, #tpu.memory_space<vmem>>, vector<2x4xf32>,
    } else {
    }
    %c0 = arith.constant 0 : index
    %c0_1 = arith.constant 0 : index
    %3 = vector.load %arg8[%c0, %c0_1] : memref<2x4xf32, #tpu.memory_space<vmem>>, vector<2x4xf32>
    %c0_2 = arith.constant 0 : index
    %c0_3 = arith.constant 0 : index
    %c0_4 = arith.constant 0 : index
    %4 = vector.load %arg1[%c0_2, %c0_3, %c0_4] : memref<2x4x128xf32, #tpu.memory_space<vmem>>, vector<2x4x128xf32>
    %cst = arith.constant dense<0.000000e+00> : vector<2x4xf32>
    %5 = vector.multi_reduction <add>, %4, %cst [2] : vector<2x4x128xf32> to vector<2x4xf32>
    %6 = arith.addf %3, %5 : vector<2x4xf32>
    %c0_5 = arith.constant 0 : index
    %c0_6 = arith.constant 0 : index
    %7 = vector.load %arg8[%c0_5, %c0_6] : memref<2x4xf32, #tpu.memory_space<vmem>>, vector<2x4xf32>
    tpu.vector_store %arg8[%c0_5, %c0_6], %6 {strides = array<i32>} : memref<2x4xf32, #tpu.memory_space<vmem>>, vector<2x4xf32>,
    %c1_i32 = arith.constant 1 : i32
    %8 = arith.cmpi eq, %arg0, %c1_i32 : i32
    %9 = arith.extui %8 : i1 to i32
    %c0_i32_7 = arith.constant 0 : i32
    %10 = arith.cmpi ne, %9, %c0_i32_7 : i32
    scf.if %10 {
      %c0_8 = arith.constant 0 : index
      %c0_9 = arith.constant 0 : index
      %11 = vector.load %arg8[%c0_8, %c0_9] : memref<2x4xf32, #tpu.memory_space<vmem>>, vector<2x4xf32>
      %cst_10 = arith.constant 3.906250e-03 : f32
      %12 = vector.broadcast %cst_10 : f32 to vector<2x4xf32>
      %13 = arith.mulf %11, %12 : vector<2x4xf32>
      %14 = arith.truncf %13 : vector<2x4xf32> to vector<2x4xbf16>
      %c0_11 = arith.constant 0 : index
      %c0_12 = arith.constant 0 : index
      %15 = vector.load %arg2[%c0_11, %c0_12] : memref<4x128xbf16, #tpu.memory_space<vmem>>, vector<4x128xbf16>
      %cst_13 = arith.constant dense<0.000000e+00> : vector<2x128xf32>
      %16 = tpu.matmul %14, %15, %cst_13 {dimension_numbers = #tpu.dot_dimension_numbers<[1], [0], [0], [1], [0, 0, 1, 1], [], []>} : vector<2x4xbf16>, vector<4x128xbf16>, vector<2x128xf32> -> vector<2x128xf32>
      %c0_14 = arith.constant 0 : index
      %c0_15 = arith.constant 0 : index
      %17 = vector.load %arg3[%c0_14, %c0_15] : memref<1x128xf32, #tpu.memory_space<vmem>>, vector<1x128xf32>
      %18 = vector.broadcast %17 : vector<1x128xf32> to vector<2x128xf32>
      %19 = arith.addf %16, %18 : vector<2x128xf32>
      %20 = arith.truncf %19 : vector<2x128xf32> to vector<2x128xbf16>
      %c0_16 = arith.constant 0 : index
      %c0_17 = arith.constant 0 : index
      %21 = vector.load %arg6[%c0_16, %c0_17] : memref<2x128xbf16, #tpu.memory_space<vmem>>, vector<2x128xbf16>
      tpu.vector_store %arg6[%c0_16, %c0_17], %20 {strides = array<i32>} : memref<2x128xbf16, #tpu.memory_space<vmem>>, vector<2x128xbf16>,
      %c0_18 = arith.constant 0 : index
      %c0_19 = arith.constant 0 : index
      %22 = vector.load %arg4[%c0_18, %c0_19] : memref<4x128xbf16, #tpu.memory_space<vmem>>, vector<4x128xbf16>
      %cst_20 = arith.constant dense<0.000000e+00> : vector<2x128xf32>
      %23 = tpu.matmul %14, %22, %cst_20 {dimension_numbers = #tpu.dot_dimension_numbers<[1], [0], [0], [1], [0, 0, 1, 1], [], []>} : vector<2x4xbf16>, vector<4x128xbf16>, vector<2x128xf32> -> vector<2x128xf32>
      %c0_21 = arith.constant 0 : index
      %c0_22 = arith.constant 0 : index
      %24 = vector.load %arg5[%c0_21, %c0_22] : memref<1x128xf32, #tpu.memory_space<vmem>>, vector<1x128xf32>
      %25 = vector.broadcast %24 : vector<1x128xf32> to vector<2x128xf32>
      %26 = arith.addf %23, %25 : vector<2x128xf32>
      %27 = arith.truncf %26 : vector<2x128xf32> to vector<2x128xbf16>
      %c0_23 = arith.constant 0 : index
      %c0_24 = arith.constant 0 : index
      %28 = vector.load %arg7[%c0_23, %c0_24] : memref<2x128xbf16, #tpu.memory_space<vmem>>, vector<2x128xbf16>
      tpu.vector_store %arg7[%c0_23, %c0_24], %27 {strides = array<i32>} : memref<2x128xbf16, #tpu.memory_space<vmem>>, vector<2x128xbf16>,
    } else {
    }
    return
  }
  func.func @transform_0(%arg0: i32) -> (i32, i32, i32) {
    %c0_i32 = arith.constant 0 : i32
    %c0_i32_0 = arith.constant 0 : i32
    %c0_i32_1 = arith.constant 0 : i32
    return %c0_i32, %c0_i32_0, %arg0 : i32, i32, i32
  }
  func.func @transform_1(%arg0: i32) -> (i32, i32) {
    %c0_i32 = arith.constant 0 : i32
    %c0_i32_0 = arith.constant 0 : i32
    %c0_i32_1 = arith.constant 0 : i32
    return %c0_i32, %c0_i32_0 : i32, i32
  }
  func.func @transform_2(%arg0: i32) -> (i32, i32) {
    %c0_i32 = arith.constant 0 : i32
    %c0_i32_0 = arith.constant 0 : i32
    %c0_i32_1 = arith.constant 0 : i32
    return %c0_i32, %c0_i32_0 : i32, i32
  }
  func.func @transform_3(%arg0: i32) -> (i32, i32) {
    %c0_i32 = arith.constant 0 : i32
    %c0_i32_0 = arith.constant 0 : i32
    %c0_i32_1 = arith.constant 0 : i32
    return %c0_i32, %c0_i32_0 : i32, i32
  }
  func.func @transform_4(%arg0: i32) -> (i32, i32) {
    %c0_i32 = arith.constant 0 : i32
    %c0_i32_0 = arith.constant 0 : i32
    %c0_i32_1 = arith.constant 0 : i32
    return %c0_i32, %c0_i32_0 : i32, i32
  }
  func.func @transform_5(%arg0: i32) -> (i32, i32) {
    %c0_i32 = arith.constant 0 : i32
    %c0_i32_0 = arith.constant 0 : i32
    %c0_i32_1 = arith.constant 0 : i32
    return %c0_i32, %c0_i32_0 : i32, i32
  }
  func.func @transform_6(%arg0: i32) -> (i32, i32) {
    %c0_i32 = arith.constant 0 : i32
    %c0_i32_0 = arith.constant 0 : i32
    %c0_i32_1 = arith.constant 0 : i32
    return %c0_i32, %c0_i32_0 : i32, i32
  }
}

</mosaic_0001>

<llo_original>
// kernel: tpu_custom_call.1
$region0: #{tpu_custom_call.1}
  #allocation0 [shape = 'u32[]', space=smem, size = 0x4, offset = 0x4, fixed_abs, tag = 'smem constant byte address 0x4 - core index']
  #allocation1 [shape = 'u32[144,128]{1,0:T(1,128)}', space=vmem, size = 0x12000, scoped, tag = 'internal scratch']
  #allocation2 [shape = 'f32[2,4]{1,0:T(2,128)}', space=vmem, size = 0x400, scoped, tag = 'scratch operand']
  %s0 = inlined_call_operand.hbm [shape: f32[2,4,256], index: 0, kind: input, shape index: {}]
  %s1 = inlined_call_operand.hbm [shape: bf16[4,128], index: 1, kind: input, shape index: {}]
  %s2 = inlined_call_operand.hbm [shape: f32[1,128], index: 2, kind: input, shape index: {}]
  %s3 = inlined_call_operand.hbm [shape: bf16[4,128], index: 3, kind: input, shape index: {}]
  %s4 = inlined_call_operand.hbm [shape: f32[1,128], index: 4, kind: input, shape index: {}]
  %s5 = inlined_call_operand.hbm [shape: bf16[2,128], index: 5, kind: output, shape index: {0}]
  %s6 = inlined_call_operand.hbm [shape: bf16[2,128], index: 6, kind: output, shape index: {1}]
  %7 = xla_tuple %s5, %s6
  %s8 = sld [smem:[#allocation0]]
  $region89: #{tpu_custom_call.1} parent=0
    _
  %s10 = ssub.s32 1, %s8
  %s11 = scalar_select 0, %s10, %s8
  $region1: #{tpu_custom_call.1} parent=0
    #allocation3 [shape = 'u8[8192]{0}', space=vmem, size = 0x2000, scoped, tag = 'input window, operand 0']
    #allocation4 [shape = 's32[2]{0}', space=sflag, size = 0x8, scoped, tag = 'scoped memory for tpu_custom_call.1']
    #allocation5 [shape = 's32[2]{0}', space=sflag, size = 0x8, scoped, tag = 'scoped memory for tpu_custom_call.1']
    #allocation6 [shape = 'u8[1024]{0}', space=vmem, size = 0x400, scoped, tag = 'input window, operand 1, single buffered']
    #allocation7 [shape = 's32[1]{0}', space=sflag, size = 0x4, scoped, tag = 'scoped memory for tpu_custom_call.1']
    #allocation8 [shape = 'u8[512]{0}', space=vmem, size = 0x400, scoped, tag = 'input window, operand 2, single buffered']
    #allocation9 [shape = 'u8[1024]{0}', space=vmem, size = 0x400, scoped, tag = 'input window, operand 3, single buffered']
    #allocation10 [shape = 's32[1]{0}', space=sflag, size = 0x4, scoped, tag = 'scoped memory for tpu_custom_call.1']
    #allocation11 [shape = 'u8[512]{0}', space=vmem, size = 0x400, scoped, tag = 'input window, operand 4, single buffered']
    #allocation12 [shape = 'u8[512]{0}', space=vmem, size = 0x400, scoped, tag = 'output window, operand 0, single buffered']
    #allocation13 [shape = 'u8[512]{0}', space=vmem, size = 0x400, scoped, tag = 'output window, operand 1, single buffered']
    #allocation14 [shape = 's32[1]{0}', space=sflag, size = 0x4, scoped, tag = 'scoped memory for tpu_custom_call.1']
    %12 = vsyncpa [#allocation4], 0
    %s13 = scalar_lea.sflag [#allocation4], 1
    %14 = vsyncpa %s13, 0
    %15 = vsyncpa [#allocation7], 0
    %16 = vsyncpa [#allocation10], 0
    %17 = vsyncpa [#allocation5], 0
    %18 = vsyncpa [#allocation14], 0
    loop: start=0, step=1, limit=4
    $region2: #{tpu_custom_call.1} parent=1 // loop_pre_header
      _
    $region3: #{tpu_custom_call.1} parent=1 // loop_header
      %s20 = sphi 0, %s24
      %p21 = scmp.ge.s32.totalorder %s20, 4
      %s30 = sphi 0, %s32
      %s33 = sphi 0, %s30
      %s34 = sphi 0, %s33
      %s50 = sphi 0, %s34
      %s54 = sphi 0, %s54
      %s56 = sphi 0, %s54
      %s57 = sphi 0, %s56
      %s71 = sphi 0, %s57
      %s75 = sphi 0, %s75
      %s77 = sphi 0, %s75
      %s78 = sphi 0, %s77
      %s92 = sphi 0, %s78
      %s96 = sphi 0, %s96
      %s98 = sphi 0, %s96
      %s99 = sphi 0, %s98
      %s113 = sphi 0, %s99
      %s117 = sphi 0, %s117
      %s119 = sphi 0, %s117
      %s120 = sphi 0, %s119
      %s134 = sphi 0, %s120
      %s138 = sphi 0, %s138
      %s140 = sphi 0, %s138
      %s141 = sphi 0, %s140
      %s155 = sphi 0, %s141
      %s159 = sphi 0, %s159
      %s161 = sphi 0, %s159
      %s162 = sphi 0, %s161
      %s176 = sphi 0, %s162
    $region4: #{tpu_custom_call.1} parent=1 // loop_header_branch
      %23 = sbr.rel (%p21) target = $region8
    $region5: #{tpu_custom_call.1} parent=1 // loop_body
      %s25 = ssub.s32 %s20, 1
      %s26 = ssub.s32 %s20, 2
      %s27 = sadd.s32 %s20, 1
      %s28 = ssub.s32 %s20, %s27
      %p29 = scmp.eq.s32.totalorder %s28, 0
      %s31 = sadd.s32 %s30, 1
      %s32 = scalar_select %p29, %s30, %s31
      %p35 = pneg %p29
      %p36 = scmp.eq.s32.totalorder %s20, 1
      %p37 = por %p35, %p36
      %p38 = scmp.ne.s32.totalorder %s30, %s33
      %p39 = scmp.eq.s32.totalorder %s20, 0
      %p40 = por %p38, %p39
      %p41 = scmp.ne.s32.totalorder %s30, %s33
      %p42 = scmp.eq.s32.totalorder %s25, 1
      %p43 = por %p41, %p42
      %p44 = scmp.ne.s32.totalorder %s33, %s34
      %p45 = scmp.eq.s32.totalorder %s25, 0
      %p46 = por %p44, %p45
      %p47 = scmp.ne.s32.totalorder %s33, %s34
      %p48 = scmp.eq.s32.totalorder %s26, 1
      %p49 = por %p47, %p48
      %p51 = scmp.ne.s32.totalorder %s34, %s50
      %p52 = scmp.eq.s32.totalorder %s26, 0
      %p53 = por %p51, %p52
      %s55 = sadd.s32 %s54, 1
      %p58 = scmp.eq.s32.totalorder %s20, 1
      %p59 = scmp.ne.s32.totalorder %s54, %s56
      %p60 = scmp.eq.s32.totalorder %s20, 0
      %p61 = por %p59, %p60
      %p62 = scmp.ne.s32.totalorder %s54, %s56
      %p63 = scmp.eq.s32.totalorder %s25, 1
      %p64 = por %p62, %p63
      %p65 = scmp.ne.s32.totalorder %s56, %s57
      %p66 = scmp.eq.s32.totalorder %s25, 0
      %p67 = por %p65, %p66
      %p68 = scmp.ne.s32.totalorder %s56, %s57
      %p69 = scmp.eq.s32.totalorder %s26, 1
      %p70 = por %p68, %p69
      %p72 = scmp.ne.s32.totalorder %s57, %s71
      %p73 = scmp.eq.s32.totalorder %s26, 0
      %p74 = por %p72, %p73
      %s76 = sadd.s32 %s75, 1
      %p79 = scmp.eq.s32.totalorder %s20, 1
      %p80 = scmp.ne.s32.totalorder %s75, %s77
      %p81 = scmp.eq.s32.totalorder %s20, 0
      %p82 = por %p80, %p81
      %p83 = scmp.ne.s32.totalorder %s75, %s77
      %p84 = scmp.eq.s32.totalorder %s25, 1
      %p85 = por %p83, %p84
      %p86 = scmp.ne.s32.totalorder %s77, %s78
      %p87 = scmp.eq.s32.totalorder %s25, 0
      %p88 = por %p86, %p87
      %p89 = scmp.ne.s32.totalorder %s77, %s78
      %p90 = scmp.eq.s32.totalorder %s26, 1
      %p91 = por %p89, %p90
      %p93 = scmp.ne.s32.totalorder %s78, %s92
      %p94 = scmp.eq.s32.totalorder %s26, 0
      %p95 = por %p93, %p94
      %s97 = sadd.s32 %s96, 1
      %p100 = scmp.eq.s32.totalorder %s20, 1
      %p101 = scmp.ne.s32.totalorder %s96, %s98
      %p102 = scmp.eq.s32.totalorder %s20, 0
      %p103 = por %p101, %p102
      %p104 = scmp.ne.s32.totalorder %s96, %s98
      %p105 = scmp.eq.s32.totalorder %s25, 1
      %p106 = por %p104, %p105
      %p107 = scmp.ne.s32.totalorder %s98, %s99
      %p108 = scmp.eq.s32.totalorder %s25, 0
      %p109 = por %p107, %p108
      %p110 = scmp.ne.s32.totalorder %s98, %s99
      %p111 = scmp.eq.s32.totalorder %s26, 1
      %p112 = por %p110, %p111
      %p114 = scmp.ne.s32.totalorder %s99, %s113
      %p115 = scmp.eq.s32.totalorder %s26, 0
      %p116 = por %p114, %p115
      %s118 = sadd.s32 %s117, 1
      %p121 = scmp.eq.s32.totalorder %s20, 1
      %p122 = scmp.ne.s32.totalorder %s117, %s119
      %p123 = scmp.eq.s32.totalorder %s20, 0
      %p124 = por %p122, %p123
      %p125 = scmp.ne.s32.totalorder %s117, %s119
      %p126 = scmp.eq.s32.totalorder %s25, 1
      %p127 = por %p125, %p126
      %p128 = scmp.ne.s32.totalorder %s119, %s120
      %p129 = scmp.eq.s32.totalorder %s25, 0
      %p130 = por %p128, %p129
      %p131 = scmp.ne.s32.totalorder %s119, %s120
      %p132 = scmp.eq.s32.totalorder %s26, 1
      %p133 = por %p131, %p132
      %p135 = scmp.ne.s32.totalorder %s120, %s134
      %p136 = scmp.eq.s32.totalorder %s26, 0
      %p137 = por %p135, %p136
      %s139 = sadd.s32 %s138, 1
      %p142 = scmp.eq.s32.totalorder %s20, 1
      %p143 = scmp.ne.s32.totalorder %s138, %s140
      %p144 = scmp.eq.s32.totalorder %s20, 0
      %p145 = por %p143, %p144
      %p146 = scmp.ne.s32.totalorder %s138, %s140
      %p147 = scmp.eq.s32.totalorder %s25, 1
      %p148 = por %p146, %p147
      %p149 = scmp.ne.s32.totalorder %s140, %s141
      %p150 = scmp.eq.s32.totalorder %s25, 0
      %p151 = por %p149, %p150
      %p152 = scmp.ne.s32.totalorder %s140, %s141
      %p153 = scmp.eq.s32.totalorder %s26, 1
      %p154 = por %p152, %p153
      %p156 = scmp.ne.s32.totalorder %s141, %s155
      %p157 = scmp.eq.s32.totalorder %s26, 0
      %p158 = por %p156, %p157
      %s160 = sadd.s32 %s159, 1
      %p163 = scmp.eq.s32.totalorder %s20, 1
      %p164 = scmp.ne.s32.totalorder %s159, %s161
      %p165 = scmp.eq.s32.totalorder %s20, 0
      %p166 = por %p164, %p165
      %p167 = scmp.ne.s32.totalorder %s159, %s161
      %p168 = scmp.eq.s32.totalorder %s25, 1
      %p169 = por %p167, %p168
      %p170 = scmp.ne.s32.totalorder %s161, %s162
      %p171 = scmp.eq.s32.totalorder %s25, 0
      %p172 = por %p170, %p171
      %p173 = scmp.ne.s32.totalorder %s161, %s162
      %p174 = scmp.eq.s32.totalorder %s26, 1
      %p175 = por %p173, %p174
      %p177 = scmp.ne.s32.totalorder %s162, %s176
      %p178 = scmp.eq.s32.totalorder %s26, 0
      %p179 = por %p177, %p178
      %p180 = scmp.le.s32.totalorder 1, %s20
      %p181 = scmp.lt.s32.totalorder %s20, 3
      %p182 = pnand %p180, %p181
      %p183 = pneg %p182
      // Predicated region
      $region9: #{tpu_custom_call.1} parent=5 // pred_check
        _
      $region10: #{tpu_custom_call.1} parent=5 // pred_check_branch
        %185 = sbr.rel (%p182) target = $region12
      $region11: #{tpu_custom_call.1} parent=5 // pred_region
        %s186 = ssub.s32 %s20, 1
        // Predicated region
        $region13: #{tpu_custom_call.1} parent=11 // pred_check
          %p187 = pneg %p67
        $region14: #{tpu_custom_call.1} parent=11 // pred_check_branch
          %189 = sbr.rel (%p187) target = $region16
        $region15: #{tpu_custom_call.1} parent=11 // pred_region
          %s191 = ssub.s32 32, 32
          %192 = vsyncadd [#allocation7], %s191
          %s194 = sshll.u32 [#allocation6], 4
          %s195 = int_to_ptr.vmem [resolvable:$true] %s194
          %197 = dma.hbm_to_vmem [thread:$0]  %s1, 32, %s195, [#allocation7]
        $region16: #{tpu_custom_call.1} parent=11 // pred_fallthru
          _
        // Predicated region
        $region17: #{tpu_custom_call.1} parent=11 // pred_check
          %p198 = pneg %p88
        $region18: #{tpu_custom_call.1} parent=11 // pred_check_branch
          %200 = sbr.rel (%p198) target = $region20
        $region19: #{tpu_custom_call.1} parent=11 // pred_region
          %s202 = ssub.s32 16, 16
          %203 = vsyncadd [#allocation7], %s202
          %s205 = sshll.u32 [#allocation8], 4
          %s206 = int_to_ptr.vmem [resolvable:$true] %s205
          %208 = dma.hbm_to_vmem [thread:$0]  %s2, 16, %s206, [#allocation7]
        $region20: #{tpu_custom_call.1} parent=11 // pred_fallthru
          _
        // Predicated region
        $region21: #{tpu_custom_call.1} parent=11 // pred_check
          %p209 = pneg %p109
        $region22: #{tpu_custom_call.1} parent=11 // pred_check_branch
          %211 = sbr.rel (%p209) target = $region24
        $region23: #{tpu_custom_call.1} parent=11 // pred_region
          %s213 = ssub.s32 32, 32
          %214 = vsyncadd [#allocation10], %s213
          %s216 = sshll.u32 [#allocation9], 4
          %s217 = int_to_ptr.vmem [resolvable:$true] %s216
          %219 = dma.hbm_to_vmem [thread:$0]  %s3, 32, %s217, [#allocation10]
        $region24: #{tpu_custom_call.1} parent=11 // pred_fallthru
          _
        // Predicated region
        $region25: #{tpu_custom_call.1} parent=11 // pred_check
          %p220 = pneg %p130
        $region26: #{tpu_custom_call.1} parent=11 // pred_check_branch
          %222 = sbr.rel (%p220) target = $region28
        $region27: #{tpu_custom_call.1} parent=11 // pred_region
          %s224 = ssub.s32 16, 16
          %225 = vsyncadd [#allocation10], %s224
          %s227 = sshll.u32 [#allocation11], 4
          %s228 = int_to_ptr.vmem [resolvable:$true] %s227
          %230 = dma.hbm_to_vmem [thread:$0]  %s4, 16, %s228, [#allocation10]
        $region28: #{tpu_custom_call.1} parent=11 // pred_fallthru
          _
      $region12: #{tpu_custom_call.1} parent=5 // pred_fallthru
        _
      %p231 = scmp.lt.s32.totalorder %s20, 2
      // Predicated region
      $region29: #{tpu_custom_call.1} parent=5 // pred_check
        %p232 = pneg %p231
      $region30: #{tpu_custom_call.1} parent=5 // pred_check_branch
        %234 = sbr.rel (%p232) target = $region32
      $region31: #{tpu_custom_call.1} parent=5 // pred_region
        // Predicated region
        $region33: #{tpu_custom_call.1} parent=31 // pred_check
          %p235 = pneg %p40
        $region34: #{tpu_custom_call.1} parent=31 // pred_check_branch
          %237 = sbr.rel (%p235) target = $region36
        $region35: #{tpu_custom_call.1} parent=31 // pred_region
          %s238 = sand.u32 %s30, 1
          %s239 = scalar_lea.sflag [#allocation4], %s238
          %s240 = sand.u32 %s30, 1
          %s241 = smul.addr %s240, 8
          %s242 = scalar_lea.vmem [#allocation3], %s241
          %s244 = ssub.s32 128, 128
          %245 = vsyncadd %s239, %s244
          %s246 = smul.addr %s20, 64
          %s247 = scalar_lea.hbm %s0, %s246
          %s248 = sshll.u32 %s242, 4
          %s249 = int_to_ptr.vmem [resolvable:$true] %s248
          %254 = dma.hbm_to_vmem [thread:$0]  %s247, 128, %s249, %s239, 128, 64, 4
        $region36: #{tpu_custom_call.1} parent=31 // pred_fallthru
          _
      $region32: #{tpu_custom_call.1} parent=5 // pred_fallthru
        _
      %p255 = scmp.le.s32.totalorder 1, %s20
      %p256 = scmp.lt.s32.totalorder %s20, 3
      %p257 = pnand %p255, %p256
      %p258 = pneg %p257
      // Predicated region
      $region37: #{tpu_custom_call.1} parent=5 // pred_check
        _
      $region38: #{tpu_custom_call.1} parent=5 // pred_check_branch
        %260 = sbr.rel (%p257) target = $region40
      $region39: #{tpu_custom_call.1} parent=5 // pred_region
        %s261 = ssub.s32 %s20, 1
        %s262 = sand.u32 %s33, 1
        %s263 = scalar_lea.sflag [#allocation4], %s262
        %s264 = sand.u32 %s33, 1
        %s265 = smul.addr %s264, 8
        %s266 = scalar_lea.vmem [#allocation3], %s265
        // Predicated region
        $region41: #{tpu_custom_call.1} parent=39 // pred_check
          %p267 = pneg %p46
        $region42: #{tpu_custom_call.1} parent=39 // pred_check_branch
          %269 = sbr.rel (%p267) target = $region44
        $region43: #{tpu_custom_call.1} parent=39 // pred_region
          %270 = dma.done %s263, 128
        $region44: #{tpu_custom_call.1} parent=39 // pred_fallthru
          _
        // Predicated region
        $region45: #{tpu_custom_call.1} parent=39 // pred_check
          %p271 = pneg %p67
        $region46: #{tpu_custom_call.1} parent=39 // pred_check_branch
          %273 = sbr.rel (%p271) target = $region48
        $region47: #{tpu_custom_call.1} parent=39 // pred_region
          %274 = dma.done [#allocation7], 32
        $region48: #{tpu_custom_call.1} parent=39 // pred_fallthru
          _
        // Predicated region
        $region49: #{tpu_custom_call.1} parent=39 // pred_check
          %p275 = pneg %p88
        $region50: #{tpu_custom_call.1} parent=39 // pred_check_branch
          %277 = sbr.rel (%p275) target = $region52
        $region51: #{tpu_custom_call.1} parent=39 // pred_region
          %278 = dma.done [#allocation7], 16
        $region52: #{tpu_custom_call.1} parent=39 // pred_fallthru
          _
        // Predicated region
        $region53: #{tpu_custom_call.1} parent=39 // pred_check
          %p279 = pneg %p109
        $region54: #{tpu_custom_call.1} parent=39 // pred_check_branch
          %281 = sbr.rel (%p279) target = $region56
        $region55: #{tpu_custom_call.1} parent=39 // pred_region
          %282 = dma.done [#allocation10], 32
        $region56: #{tpu_custom_call.1} parent=39 // pred_fallthru
          _
        // Predicated region
        $region57: #{tpu_custom_call.1} parent=39 // pred_check
          %p283 = pneg %p130
        $region58: #{tpu_custom_call.1} parent=39 // pred_check_branch
          %285 = sbr.rel (%p283) target = $region60
        $region59: #{tpu_custom_call.1} parent=39 // pred_region
          %286 = dma.done [#allocation10], 16
        $region60: #{tpu_custom_call.1} parent=39 // pred_fallthru
          _
        %s287 = sand.u32 %s33, 1
        %s288 = scalar_lea.sflag [#allocation4], %s287
        %s289 = sand.u32 %s33, 1
        %s290 = smul.addr %s289, 8
        %s291 = scalar_lea.vmem [#allocation3], %s290
        %p292 = pneg %p46
        %p293 = pneg %p43
        %p294 = pneg %p67
        %p295 = pneg %p64
        %p296 = pneg %p88
        %p297 = pneg %p85
        %p298 = pneg %p109
        %p299 = pneg %p106
        %p300 = pneg %p130
        %p301 = pneg %p127
        %p302 = pneg %p151
        %p303 = pneg %p148
        %p304 = pneg %p172
        %p305 = pneg %p169
        %p307 = scmp.eq.s32.totalorder %s25, 0
        // Predicated region
        $region61: #{tpu_custom_call.1} parent=39 // pred_check
          %p308 = pneg %p307
        $region62: #{tpu_custom_call.1} parent=39 // pred_check_branch
          %310 = sbr.rel (%p308) target = $region64
        $region63: #{tpu_custom_call.1} parent=39 // pred_region
          %vm311 = vcmask 25600
          %312 = vst.msk [vmem:[#allocation2] sm:$0x3] %vm311, 0.0
        $region64: #{tpu_custom_call.1} parent=39 // pred_fallthru
          _
        %v313 = vld [vmem:[#allocation2] sm:$0x3]
        %v314 = vld [vmem:[%s266] sm:$0xf]
        %v315 = vld [vmem:[%s266 + $0x4] sm:$0xf]
        %vm316 = vcmask 1043456
        %v317 = vsel %vm316, %v314, 0.0
        %318 = vadd.xlane.f32.xlu0 %v317
        %v319 = vpop.xlane.xlu0 %318
        %v320 = vsel %vm316, %v315, 0.0
        %321 = vadd.xlane.f32.xlu0 %v320
        %v322 = vpop.xlane.xlu0 %321
        %v325 = vlaneseq
        %v326 = vand.u32 %v325, 127
        %v327 = vlaneseq
        %v328 = vshrl.u32 %v327, 7
        %v329 = vsub.s32 %v326, %v328
        %v330 = vrot.slane %v319, %v329
        %v331 = vlaneseq
        %v332 = vshrl.u32 %v331, 7
        %v333 = vsub.s32 %v326, %v332
        %v334 = vrot.slane %v322, %v333
        %vm335 = vcmask 1041409
        %v336 = vsel %vm335, %v334, %v330
        %v338 = vadd.f32 %v313, %v336
        %vm339 = vcmask 25600
        %340 = vst.msk [vmem:[#allocation2] sm:$0x3] %vm339, %v338
        %p341 = scmp.eq.s32.totalorder %s25, 1
        // Predicated region
        $region65: #{tpu_custom_call.1} parent=39 // pred_check
          %p342 = pneg %p341
        $region66: #{tpu_custom_call.1} parent=39 // pred_check_branch
          %344 = sbr.rel (%p342) target = $region68
        $region67: #{tpu_custom_call.1} parent=39 // pred_region
          %v345 = vld [vmem:[#allocation2] sm:$0x3]
          %v346 = vmul.f32 %v345, 0.00390625
          %v347 = vpack.c.bf16 %v346, %v346
          %v348 = vld [vmem:[#allocation6] sm:$0x3]
          %v349 = vld [vmem:[#allocation8] sm:$0x1]
          %v351 = vlaneseq
          %v352 = vshrl.u32 %v351, 7
          %v353 = vsub.s32 0, %v352
          %v354 = vrot.slane %v349, %v353
          %vm356 = vcmask 31744
          %v358 = vsel %vm356, %v347, 0
          %vm360 = vcmask 1041408
          %v362 = vsel %vm360, %v348, 0
          %364 = vmatprep.subr.bf16.mxu0 0
          %365 = vmatpush1.bf16.msra.mxu0 %v362
          %366 = vmatprep.subr.bf16.mxu0 0
          %367 = vmatpush1.bf16.msra.mxu0 0
          %368 = vmatprep.subr.bf16.mxu0 0
          %369 = vmatpush1.bf16.msra.mxu0 0
          %370 = vmatprep.subr.bf16.mxu0 0
          %371 = vmatpush1.bf16.msra.mxu0 0
          %372 = vmatprep.subr.bf16.mxu0 0
          %373 = vmatpush1.bf16.msra.mxu0 0
          %374 = vmatprep.subr.bf16.mxu0 0
          %375 = vmatpush1.bf16.msra.mxu0 0
          %376 = vmatprep.subr.bf16.mxu0 0
          %377 = vmatpush1.bf16.msra.mxu0 0
          %378 = vmatprep.subr.bf16.mxu0 0
          %379 = vmatpush1.bf16.msra.mxu0 0
          %380 = vmatprep.subr.bf16.mxu0 0
          %381 = vmatpush1.bf16.msra.mxu0 0
          %382 = vmatprep.subr.bf16.mxu0 0
          %383 = vmatpush1.bf16.msra.mxu0 0
          %384 = vmatprep.subr.bf16.mxu0 0
          %385 = vmatpush1.bf16.msra.mxu0 0
          %386 = vmatprep.subr.bf16.mxu0 0
          %387 = vmatpush1.bf16.msra.mxu0 0
          %388 = vmatprep.subr.bf16.mxu0 0
          %389 = vmatpush1.bf16.msra.mxu0 0
          %390 = vmatprep.subr.bf16.mxu0 0
          %391 = vmatpush1.bf16.msra.mxu0 0
          %392 = vmatprep.subr.bf16.mxu0 0
          %393 = vmatpush1.bf16.msra.mxu0 0
          %394 = vmatprep.subr.bf16.mxu0 0
          %395 = vmatpush1.bf16.msra.mxu0 0
          %396 = vmatprep.mubr.bf16.mxu0 0
          %397 = vmatmul.mubr.bf16.gmra.mrb[0].mxu0 %v358
          %v398 = vpop.f32.mrb[0].mxu0
          %v399 = vadd.f32 %v354, %v398
          %v400 = vpop.f32.mrb[0].mxu0
          %v401 = vpop.f32.mrb[0].mxu0
          %v402 = vpop.f32.mrb[0].mxu0
          %403 = vdwg.mxu0
          %v404 = vpack.c.bf16 %v399, %v399
          %405 = vst [vmem:[#allocation12] sm:$0x1] %v404
          %v406 = vld [vmem:[#allocation9] sm:$0x3]
          %v407 = vld [vmem:[#allocation11] sm:$0x1]
          %v409 = vlaneseq
          %v410 = vshrl.u32 %v409, 7
          %v411 = vsub.s32 0, %v410
          %v412 = vrot.slane %v407, %v411
          %v415 = vsel %vm360, %v406, 0
          %417 = vmatprep.subr.bf16.mxu0 0
          %418 = vmatpush1.bf16.msra.mxu0 %v415
          %419 = vmatprep.subr.bf16.mxu0 0
          %420 = vmatpush1.bf16.msra.mxu0 0
          %421 = vmatprep.subr.bf16.mxu0 0
          %422 = vmatpush1.bf16.msra.mxu0 0
          %423 = vmatprep.subr.bf16.mxu0 0
          %424 = vmatpush1.bf16.msra.mxu0 0
          %425 = vmatprep.subr.bf16.mxu0 0
          %426 = vmatpush1.bf16.msra.mxu0 0
          %427 = vmatprep.subr.bf16.mxu0 0
          %428 = vmatpush1.bf16.msra.mxu0 0
          %429 = vmatprep.subr.bf16.mxu0 0
          %430 = vmatpush1.bf16.msra.mxu0 0
          %431 = vmatprep.subr.bf16.mxu0 0
          %432 = vmatpush1.bf16.msra.mxu0 0
          %433 = vmatprep.subr.bf16.mxu0 0
          %434 = vmatpush1.bf16.msra.mxu0 0
          %435 = vmatprep.subr.bf16.mxu0 0
          %436 = vmatpush1.bf16.msra.mxu0 0
          %437 = vmatprep.subr.bf16.mxu0 0
          %438 = vmatpush1.bf16.msra.mxu0 0
          %439 = vmatprep.subr.bf16.mxu0 0
          %440 = vmatpush1.bf16.msra.mxu0 0
          %441 = vmatprep.subr.bf16.mxu0 0
          %442 = vmatpush1.bf16.msra.mxu0 0
          %443 = vmatprep.subr.bf16.mxu0 0
          %444 = vmatpush1.bf16.msra.mxu0 0
          %445 = vmatprep.subr.bf16.mxu0 0
          %446 = vmatpush1.bf16.msra.mxu0 0
          %447 = vmatprep.subr.bf16.mxu0 0
          %448 = vmatpush1.bf16.msra.mxu0 0
          %449 = vmatprep.mubr.bf16.mxu0 0
          %450 = vmatmul.mubr.bf16.gmra.mrb[0].mxu0 %v358
          %v451 = vpop.f32.mrb[0].mxu0
          %v452 = vadd.f32 %v412, %v451
          %v453 = vpop.f32.mrb[0].mxu0
          %v454 = vpop.f32.mrb[0].mxu0
          %v455 = vpop.f32.mrb[0].mxu0
          %456 = vdwg.mxu0
          %v457 = vpack.c.bf16 %v452, %v452
          %458 = vst [vmem:[#allocation13] sm:$0x1] %v457
        $region68: #{tpu_custom_call.1} parent=39 // pred_fallthru
          _
        // Predicated region
        $region69: #{tpu_custom_call.1} parent=39 // pred_check
          %p459 = pneg %p148
        $region70: #{tpu_custom_call.1} parent=39 // pred_check_branch
          %461 = sbr.rel (%p459) target = $region72
        $region71: #{tpu_custom_call.1} parent=39 // pred_region
          %s463 = ssub.s32 16, 16
          %464 = vsyncadd [#allocation5], %s463
          %s466 = sshll.u32 [#allocation12], 4
          %s467 = int_to_ptr.vmem [resolvable:$true] %s466
          %469 = dma.vmem_to_hbm [thread:$0]  %s467, 16, %s5, [#allocation5]
        $region72: #{tpu_custom_call.1} parent=39 // pred_fallthru
          _
        // Predicated region
        $region73: #{tpu_custom_call.1} parent=39 // pred_check
          %p470 = pneg %p169
        $region74: #{tpu_custom_call.1} parent=39 // pred_check_branch
          %472 = sbr.rel (%p470) target = $region76
        $region75: #{tpu_custom_call.1} parent=39 // pred_region
          %s474 = ssub.s32 16, 16
          %475 = vsyncadd [#allocation14], %s474
          %s477 = sshll.u32 [#allocation13], 4
          %s478 = int_to_ptr.vmem [resolvable:$true] %s477
          %480 = dma.vmem_to_hbm [thread:$0]  %s478, 16, %s6, [#allocation14]
        $region76: #{tpu_custom_call.1} parent=39 // pred_fallthru
          _
        // Predicated region
        $region77: #{tpu_custom_call.1} parent=39 // pred_check
          %p481 = pneg %p148
        $region78: #{tpu_custom_call.1} parent=39 // pred_check_branch
          %483 = sbr.rel (%p481) target = $region80
        $region79: #{tpu_custom_call.1} parent=39 // pred_region
          %484 = dma.done [#allocation5], 16
        $region80: #{tpu_custom_call.1} parent=39 // pred_fallthru
          _
        // Predicated region
        $region81: #{tpu_custom_call.1} parent=39 // pred_check
          %p485 = pneg %p169
        $region82: #{tpu_custom_call.1} parent=39 // pred_check_branch
          %487 = sbr.rel (%p485) target = $region84
        $region83: #{tpu_custom_call.1} parent=39 // pred_region
          %488 = dma.done [#allocation14], 16
        $region84: #{tpu_custom_call.1} parent=39 // pred_fallthru
          _
      $region40: #{tpu_custom_call.1} parent=5 // pred_fallthru
        _
      %p489 = scmp.le.s32.totalorder 2, %s20
      // Predicated region
      $region85: #{tpu_custom_call.1} parent=5 // pred_check
        %p490 = pneg %p489
      $region86: #{tpu_custom_call.1} parent=5 // pred_check_branch
        %492 = sbr.rel (%p490) target = $region88
      $region87: #{tpu_custom_call.1} parent=5 // pred_region
        %s493 = ssub.s32 %s20, 2
      $region88: #{tpu_custom_call.1} parent=5 // pred_fallthru
        _
    $region6: #{tpu_custom_call.1} parent=1 // loop_footer
      %s24 = sadd.s32 1, %s20
    $region7: #{tpu_custom_call.1} parent=1 // loop_footer_branch
      %19 = sbr.rel target = $region3
    $region8: #{tpu_custom_call.1} parent=1 // loop_exit
      _
    %494 = vsyncpa [#allocation4], 1
    %s495 = scalar_lea.sflag [#allocation4], 1
    %496 = vsyncpa %s495, 1
    %497 = vsyncpa [#allocation7], 1
    %498 = vsyncpa [#allocation10], 1
    %499 = vsyncpa [#allocation5], 1
    %s500 = scalar_lea.sflag [#allocation5], 1
    %501 = vsyncpa %s500, 1
    %502 = vsyncpa [#allocation14], 1

</llo_original>
